<compile_context>
chip_gen: v7x
topology: tpu7x:2x2x1
jax: 0.10.0
libtpu: 0.0.40
codegen_flags: <defaults>
</compile_context>

<pallas_src>
import functools

import jax
import jax.numpy as jnp
from jax import lax
from jax.experimental import pallas as pl
from jax.experimental.pallas import tpu as pltpu


def _dwconv_bn_kernel(x_ref, w_ref, gamma_ref, beta_ref, o_ref, xp_ref,
                      *, n, h, w, eps):
    cb = x_ref.shape[-1]

    # Build the zero-padded input tile in VMEM (halo of 1 on H and W).
    xp_ref[...] = jnp.zeros_like(xp_ref)
    xp_ref[:, 1:h + 1, 1:w + 1, :] = x_ref[...].astype(jnp.float32)

    wt = w_ref[...].astype(jnp.float32)                       # (3, 3, Cb)

    # Hoist the W-axis (sublane) shifts: three column views, shape (N, H+2, W, Cb).
    cols = [xp_ref[:, :, kw:kw + w, :] for kw in range(3)]

    # 3x3 depthwise conv = 9 shifted FMAs; H-axis shifts are leading-dim offsets.
    acc = cols[0][:, 0:h] * wt[0, 0]
    for kh in range(3):
        for kw in range(3):
            if kh == 0 and kw == 0:
                continue
            acc = acc + cols[kw][:, kh:kh + h] * wt[kh, kw]

    # BatchNorm2d (training mode): per-channel mean / biased variance over (N,H,W),
    # one reduction pass (sum + sum-of-squares), folded into a single scale/shift FMA.
    inv_cnt = 1.0 / float(n * h * w)
    mean = jnp.sum(acc, axis=(0, 1, 2), keepdims=True) * inv_cnt            # (1,1,1,Cb)
    var = jnp.sum(acc * acc, axis=(0, 1, 2), keepdims=True) * inv_cnt - mean * mean
    inv = lax.rsqrt(var + eps)
    scale = gamma_ref[...] * inv                                            # -> (1,1,1,Cb)
    shift = beta_ref[...] - mean * scale

    y = acc * scale + shift                                                 # (N, H, W, Cb)
    o_ref[...] = y.reshape(n * h * w, cb).astype(o_ref.dtype)


def dwconv3x3_bn(x_nchw, weight, gamma, beta, *, eps=1e-3, c_block=None):
    """x_nchw: (N, C, H, W); weight: (C, 1, 3, 3) PyTorch depthwise layout."""
    N, C, H, W = x_nchw.shape
    if c_block is None:
        # Large channel blocks: grid of 2 when possible (keeps both v7x TensorCores
        # busy), else a single full-C block. VMEM usage is tiny either way.
        c_block = C // 2 if (C % 2 == 0 and (C // 2) % 128 == 0) else C
    assert C % c_block == 0, "channel count must be a multiple of the channel block"

    # NCHW boundary layout is imposed by the PyTorch module; inside a larger NHWC
    # model these two transposes should be elided / fused into neighbouring ops.
    x_nhwc = jnp.transpose(x_nchw, (0, 2, 3, 1))              # (N, H, W, C) — no HBM pad
    w_khkwc = jnp.transpose(weight[:, 0, :, :], (1, 2, 0))    # (3, 3, C)
    g = gamma.reshape(1, C).astype(jnp.float32)
    b = beta.reshape(1, C).astype(jnp.float32)

    kernel = functools.partial(_dwconv_bn_kernel, n=N, h=H, w=W, eps=eps)

    out_2d = pl.pallas_call(
        kernel,
        out_shape=jax.ShapeDtypeStruct((N * H * W, C), x_nchw.dtype),
        grid_spec=pltpu.PrefetchScalarGridSpec(
            num_scalar_prefetch=0,
            grid=(C // c_block,),
            in_specs=[
                pl.BlockSpec((N, H, W, c_block), lambda c: (0, 0, 0, c)),
                pl.BlockSpec((3, 3, c_block), lambda c: (0, 0, c)),
                pl.BlockSpec((1, c_block), lambda c: (0, c)),
                pl.BlockSpec((1, c_block), lambda c: (0, c)),
            ],
            out_specs=pl.BlockSpec((N * H * W, c_block), lambda c: (0, c)),
            scratch_shapes=[pltpu.VMEM((N, H + 2, W + 2, c_block), jnp.float32)],
        ),
        compiler_params=pltpu.CompilerParams(dimension_semantics=("parallel",)),
    )(x_nhwc, w_khkwc, g, b)

    return jnp.transpose(out_2d.reshape(N, H, W, C), (0, 3, 1, 2))   # back to NCHW


def _reference(x, weight, gamma, beta, eps=1e-3):
    y = lax.conv_general_dilated(
        x, weight, window_strides=(1, 1), padding=((1, 1), (1, 1)),
        dimension_numbers=("NCHW", "OIHW", "NCHW"),
        feature_group_count=x.shape[1])
    mean = jnp.mean(y, axis=(0, 2, 3), keepdims=True)
    var = jnp.mean((y - mean) ** 2, axis=(0, 2, 3), keepdims=True)
    return ((y - mean) * lax.rsqrt(var + eps)
            * gamma.reshape(1, -1, 1, 1) + beta.reshape(1, -1, 1, 1))


if __name__ == "__main__":
    # Small shapes consistent with the module (depthwise conv + BN over channels).
    # The real module uses (1, 2304, 7, 7); here: batch=2, channels=256, spatial=8.
    N, C, H, W = 2, 256, 8, 8
    key = jax.random.PRNGKey(0)
    kx, kw, kg, kb = jax.random.split(key, 4)

    x = jax.random.normal(kx, (N, C, H, W), dtype=jnp.float32)
    weight = jax.random.normal(kw, (C, 1, 3, 3), dtype=jnp.float32) * 0.1   # depthwise weight
    gamma = 1.0 + 0.1 * jax.random.normal(kg, (C,), dtype=jnp.float32)
    beta = 0.1 * jax.random.normal(kb, (C,), dtype=jnp.float32)

    out = dwconv3x3_bn(x, weight, gamma, beta, eps=1e-3)
    out = jax.block_until_ready(out)

    ref = _reference(x, weight, gamma, beta, eps=1e-3)
    assert out.shape == (N, C, H, W)
    assert jnp.allclose(out, ref, atol=1e-4, rtol=1e-4), float(jnp.max(jnp.abs(out - ref)))

    print("KERNEL_OK")
</pallas_src>

<mosaic_0001>
module attributes {stable_mosaic.version = 11 : i64} {
  func.func @_dwconv_bn_kernel(%arg0: i32, %arg1: memref<2x8x8x128xf32, #tpu.memory_space<vmem>>, %arg2: memref<3x3x128xf32, #tpu.memory_space<vmem>>, %arg3: memref<1x128xf32, #tpu.memory_space<vmem>>, %arg4: memref<1x128xf32, #tpu.memory_space<vmem>>, %arg5: memref<128x128xf32, #tpu.memory_space<vmem>>, %arg6: memref<2x10x10x128xf32, #tpu.memory_space<vmem>>) attributes {dimension_semantics = [#tpu.dimension_semantics<parallel>], iteration_bounds = array<i64: 2>, scalar_prefetch = 0 : i64, scratch_operands = 1 : i64, tpu.core_type = #tpu.core_type<tc>, window_params = [{transform_indices = @transform_0, window_bounds = array<i64: 2, 8, 8, 128>}, {transform_indices = @transform_1, window_bounds = array<i64: 3, 3, 128>}, {transform_indices = @transform_2, window_bounds = array<i64: 1, 128>}, {transform_indices = @transform_3, window_bounds = array<i64: 1, 128>}, {transform_indices = @transform_4, window_bounds = array<i64: 128, 128>}]} {
    %cst = arith.constant 0.000000e+00 : f32
    %0 = vector.broadcast %cst : f32 to vector<2x10x10x128xf32>
    %c0 = arith.constant 0 : index
    %c0_0 = arith.constant 0 : index
    %c0_1 = arith.constant 0 : index
    %c0_2 = arith.constant 0 : index
    %1 = vector.load %arg6[%c0, %c0_0, %c0_1, %c0_2] : memref<2x10x10x128xf32, #tpu.memory_space<vmem>>, vector<2x10x10x128xf32>
    tpu.vector_store %arg6[%c0, %c0_0, %c0_1, %c0_2], %0 {strides = array<i32>} : memref<2x10x10x128xf32, #tpu.memory_space<vmem>>, vector<2x10x10x128xf32>,
    %c0_3 = arith.constant 0 : index
    %c0_4 = arith.constant 0 : index
    %c0_5 = arith.constant 0 : index
    %c0_6 = arith.constant 0 : index
    %2 = vector.load %arg1[%c0_3, %c0_4, %c0_5, %c0_6] : memref<2x8x8x128xf32, #tpu.memory_space<vmem>>, vector<2x8x8x128xf32>
    %c0_7 = arith.constant 0 : index
    %c1 = arith.constant 1 : index
    %c1_8 = arith.constant 1 : index
    %c0_9 = arith.constant 0 : index
    %3 = vector.load %arg6[%c0_7, %c1, %c1_8, %c0_9] : memref<2x10x10x128xf32, #tpu.memory_space<vmem>>, vector<2x8x8x128xf32>
    tpu.vector_store %arg6[%c0_7, %c1, %c1_8, %c0_9], %2 {strides = array<i32>} : memref<2x10x10x128xf32, #tpu.memory_space<vmem>>, vector<2x8x8x128xf32>,
    %c0_10 = arith.constant 0 : index
    %c0_11 = arith.constant 0 : index
    %c0_12 = arith.constant 0 : index
    %4 = vector.load %arg2[%c0_10, %c0_11, %c0_12] : memref<3x3x128xf32, #tpu.memory_space<vmem>>, vector<3x3x128xf32>
    %c0_13 = arith.constant 0 : index
    %c0_14 = arith.constant 0 : index
    %c0_15 = arith.constant 0 : index
    %c0_16 = arith.constant 0 : index
    %5 = vector.load %arg6[%c0_13, %c0_14, %c0_15, %c0_16] : memref<2x10x10x128xf32, #tpu.memory_space<vmem>>, vector<2x10x8x128xf32>
    %c0_17 = arith.constant 0 : index
    %c0_18 = arith.constant 0 : index
    %c1_19 = arith.constant 1 : index
    %c0_20 = arith.constant 0 : index
    %6 = vector.load %arg6[%c0_17, %c0_18, %c1_19, %c0_20] : memref<2x10x10x128xf32, #tpu.memory_space<vmem>>, vector<2x10x8x128xf32>
    %c0_21 = arith.constant 0 : index
    %c0_22 = arith.constant 0 : index
    %c2 = arith.constant 2 : index
    %c0_23 = arith.constant 0 : index
    %7 = vector.load %arg6[%c0_21, %c0_22, %c2, %c0_23] : memref<2x10x10x128xf32, #tpu.memory_space<vmem>>, vector<2x10x8x128xf32>
    %8 = vector.extract_strided_slice %5 {offsets = [0, 0, 0, 0], sizes = [2, 8, 8, 128], strides = [1, 1, 1, 1]} : vector<2x10x8x128xf32> to vector<2x8x8x128xf32>
    %9 = vector.extract_strided_slice %4 {offsets = [0, 0, 0], sizes = [1, 1, 128], strides = [1, 1, 1]} : vector<3x3x128xf32> to vector<1x1x128xf32>
    %10 = vector.shape_cast %9 : vector<1x1x128xf32> to vector<128xf32>
    %11 = vector.shape_cast %10 : vector<128xf32> to vector<1x1x1x128xf32>
    %12 = vector.broadcast %11 : vector<1x1x1x128xf32> to vector<2x8x8x128xf32>
    %13 = arith.mulf %8, %12 : vector<2x8x8x128xf32>
    %14 = vector.extract_strided_slice %6 {offsets = [0, 0, 0, 0], sizes = [2, 8, 8, 128], strides = [1, 1, 1, 1]} : vector<2x10x8x128xf32> to vector<2x8x8x128xf32>
    %15 = vector.extract_strided_slice %4 {offsets = [0, 1, 0], sizes = [1, 1, 128], strides = [1, 1, 1]} : vector<3x3x128xf32> to vector<1x1x128xf32>
    %16 = vector.shape_cast %15 : vector<1x1x128xf32> to vector<128xf32>
    %17 = vector.shape_cast %16 : vector<128xf32> to vector<1x1x1x128xf32>
    %18 = vector.broadcast %17 : vector<1x1x1x128xf32> to vector<2x8x8x128xf32>
    %19 = arith.mulf %14, %18 : vector<2x8x8x128xf32>
    %20 = arith.addf %13, %19 : vector<2x8x8x128xf32>
    %21 = vector.extract_strided_slice %7 {offsets = [0, 0, 0, 0], sizes = [2, 8, 8, 128], strides = [1, 1, 1, 1]} : vector<2x10x8x128xf32> to vector<2x8x8x128xf32>
    %22 = vector.extract_strided_slice %4 {offsets = [0, 2, 0], sizes = [1, 1, 128], strides = [1, 1, 1]} : vector<3x3x128xf32> to vector<1x1x128xf32>
    %23 = vector.shape_cast %22 : vector<1x1x128xf32> to vector<128xf32>
    %24 = vector.shape_cast %23 : vector<128xf32> to vector<1x1x1x128xf32>
    %25 = vector.broadcast %24 : vector<1x1x1x128xf32> to vector<2x8x8x128xf32>
    %26 = arith.mulf %21, %25 : vector<2x8x8x128xf32>
    %27 = arith.addf %20, %26 : vector<2x8x8x128xf32>
    %28 = vector.extract_strided_slice %5 {offsets = [0, 1, 0, 0], sizes = [2, 8, 8, 128], strides = [1, 1, 1, 1]} : vector<2x10x8x128xf32> to vector<2x8x8x128xf32>
    %29 = vector.extract_strided_slice %4 {offsets = [1, 0, 0], sizes = [1, 1, 128], strides = [1, 1, 1]} : vector<3x3x128xf32> to vector<1x1x128xf32>
    %30 = vector.shape_cast %29 : vector<1x1x128xf32> to vector<128xf32>
    %31 = vector.shape_cast %30 : vector<128xf32> to vector<1x1x1x128xf32>
    %32 = vector.broadcast %31 : vector<1x1x1x128xf32> to vector<2x8x8x128xf32>
    %33 = arith.mulf %28, %32 : vector<2x8x8x128xf32>
    %34 = arith.addf %27, %33 : vector<2x8x8x128xf32>
    %35 = vector.extract_strided_slice %6 {offsets = [0, 1, 0, 0], sizes = [2, 8, 8, 128], strides = [1, 1, 1, 1]} : vector<2x10x8x128xf32> to vector<2x8x8x128xf32>
    %36 = vector.extract_strided_slice %4 {offsets = [1, 1, 0], sizes = [1, 1, 128], strides = [1, 1, 1]} : vector<3x3x128xf32> to vector<1x1x128xf32>
    %37 = vector.shape_cast %36 : vector<1x1x128xf32> to vector<128xf32>
    %38 = vector.shape_cast %37 : vector<128xf32> to vector<1x1x1x128xf32>
    %39 = vector.broadcast %38 : vector<1x1x1x128xf32> to vector<2x8x8x128xf32>
    %40 = arith.mulf %35, %39 : vector<2x8x8x128xf32>
    %41 = arith.addf %34, %40 : vector<2x8x8x128xf32>
    %42 = vector.extract_strided_slice %7 {offsets = [0, 1, 0, 0], sizes = [2, 8, 8, 128], strides = [1, 1, 1, 1]} : vector<2x10x8x128xf32> to vector<2x8x8x128xf32>
    %43 = vector.extract_strided_slice %4 {offsets = [1, 2, 0], sizes = [1, 1, 128], strides = [1, 1, 1]} : vector<3x3x128xf32> to vector<1x1x128xf32>
    %44 = vector.shape_cast %43 : vector<1x1x128xf32> to vector<128xf32>
    %45 = vector.shape_cast %44 : vector<128xf32> to vector<1x1x1x128xf32>
    %46 = vector.broadcast %45 : vector<1x1x1x128xf32> to vector<2x8x8x128xf32>
    %47 = arith.mulf %42, %46 : vector<2x8x8x128xf32>
    %48 = arith.addf %41, %47 : vector<2x8x8x128xf32>
    %49 = vector.extract_strided_slice %5 {offsets = [0, 2, 0, 0], sizes = [2, 8, 8, 128], strides = [1, 1, 1, 1]} : vector<2x10x8x128xf32> to vector<2x8x8x128xf32>
    %50 = vector.extract_strided_slice %4 {offsets = [2, 0, 0], sizes = [1, 1, 128], strides = [1, 1, 1]} : vector<3x3x128xf32> to vector<1x1x128xf32>
    %51 = vector.shape_cast %50 : vector<1x1x128xf32> to vector<128xf32>
    %52 = vector.shape_cast %51 : vector<128xf32> to vector<1x1x1x128xf32>
    %53 = vector.broadcast %52 : vector<1x1x1x128xf32> to vector<2x8x8x128xf32>
    %54 = arith.mulf %49, %53 : vector<2x8x8x128xf32>
    %55 = arith.addf %48, %54 : vector<2x8x8x128xf32>
    %56 = vector.extract_strided_slice %6 {offsets = [0, 2, 0, 0], sizes = [2, 8, 8, 128], strides = [1, 1, 1, 1]} : vector<2x10x8x128xf32> to vector<2x8x8x128xf32>
    %57 = vector.extract_strided_slice %4 {offsets = [2, 1, 0], sizes = [1, 1, 128], strides = [1, 1, 1]} : vector<3x3x128xf32> to vector<1x1x128xf32>
    %58 = vector.shape_cast %57 : vector<1x1x128xf32> to vector<128xf32>
    %59 = vector.shape_cast %58 : vector<128xf32> to vector<1x1x1x128xf32>
    %60 = vector.broadcast %59 : vector<1x1x1x128xf32> to vector<2x8x8x128xf32>
    %61 = arith.mulf %56, %60 : vector<2x8x8x128xf32>
    %62 = arith.addf %55, %61 : vector<2x8x8x128xf32>
    %63 = vector.extract_strided_slice %7 {offsets = [0, 2, 0, 0], sizes = [2, 8, 8, 128], strides = [1, 1, 1, 1]} : vector<2x10x8x128xf32> to vector<2x8x8x128xf32>
    %64 = vector.extract_strided_slice %4 {offsets = [2, 2, 0], sizes = [1, 1, 128], strides = [1, 1, 1]} : vector<3x3x128xf32> to vector<1x1x128xf32>
    %65 = vector.shape_cast %64 : vector<1x1x128xf32> to vector<128xf32>
    %66 = vector.shape_cast %65 : vector<128xf32> to vector<1x1x1x128xf32>
    %67 = vector.broadcast %66 : vector<1x1x1x128xf32> to vector<2x8x8x128xf32>
    %68 = arith.mulf %63, %67 : vector<2x8x8x128xf32>
    %69 = arith.addf %62, %68 : vector<2x8x8x128xf32>
    %cst_24 = arith.constant dense<0.000000e+00> : vector<128xf32>
    %70 = vector.multi_reduction <add>, %69, %cst_24 [0, 1, 2] : vector<2x8x8x128xf32> to vector<128xf32>
    %71 = vector.shape_cast %70 : vector<128xf32> to vector<1x1x1x128xf32>
    %cst_25 = arith.constant 7.812500e-03 : f32
    %72 = vector.broadcast %cst_25 : f32 to vector<1x1x1x128xf32>
    %73 = arith.mulf %71, %72 : vector<1x1x1x128xf32>
    %74 = arith.mulf %69, %69 : vector<2x8x8x128xf32>
    %cst_26 = arith.constant dense<0.000000e+00> : vector<128xf32>
    %75 = vector.multi_reduction <add>, %74, %cst_26 [0, 1, 2] : vector<2x8x8x128xf32> to vector<128xf32>
    %76 = vector.shape_cast %75 : vector<128xf32> to vector<1x1x1x128xf32>
    %cst_27 = arith.constant 7.812500e-03 : f32
    %77 = vector.broadcast %cst_27 : f32 to vector<1x1x1x128xf32>
    %78 = arith.mulf %76, %77 : vector<1x1x1x128xf32>
    %79 = arith.mulf %73, %73 : vector<1x1x1x128xf32>
    %80 = arith.subf %78, %79 : vector<1x1x1x128xf32>
    %cst_28 = arith.constant 1.000000e-03 : f32
    %81 = vector.broadcast %cst_28 : f32 to vector<1x1x1x128xf32>
    %82 = arith.addf %80, %81 : vector<1x1x1x128xf32>
    %83 = math.rsqrt %82 : vector<1x1x1x128xf32>
    %c0_29 = arith.constant 0 : index
    %c0_30 = arith.constant 0 : index
    %84 = vector.load %arg3[%c0_29, %c0_30] : memref<1x128xf32, #tpu.memory_space<vmem>>, vector<1x128xf32>
    %85 = vector.shape_cast %84 : vector<1x128xf32> to vector<1x1x1x128xf32>
    %86 = arith.mulf %85, %83 : vector<1x1x1x128xf32>
    %c0_31 = arith.constant 0 : index
    %c0_32 = arith.constant 0 : index
    %87 = vector.load %arg4[%c0_31, %c0_32] : memref<1x128xf32, #tpu.memory_space<vmem>>, vector<1x128xf32>
    %88 = arith.mulf %73, %86 : vector<1x1x1x128xf32>
    %89 = vector.shape_cast %87 : vector<1x128xf32> to vector<1x1x1x128xf32>
    %90 = arith.subf %89, %88 : vector<1x1x1x128xf32>
    %91 = vector.broadcast %86 : vector<1x1x1x128xf32> to vector<2x8x8x128xf32>
    %92 = arith.mulf %69, %91 : vector<2x8x8x128xf32>
    %93 = vector.broadcast %90 : vector<1x1x1x128xf32> to vector<2x8x8x128xf32>
    %94 = arith.addf %92, %93 : vector<2x8x8x128xf32>
    %95 = vector.shape_cast %94 : vector<2x8x8x128xf32> to vector<128x128xf32>
    %c0_33 = arith.constant 0 : index
    %c0_34 = arith.constant 0 : index
    %96 = vector.load %arg5[%c0_33, %c0_34] : memref<128x128xf32, #tpu.memory_space<vmem>>, vector<128x128xf32>
    tpu.vector_store %arg5[%c0_33, %c0_34], %95 {strides = array<i32>} : memref<128x128xf32, #tpu.memory_space<vmem>>, vector<128x128xf32>,
    return
  }
  func.func @transform_0(%arg0: i32) -> (i32, i32, i32, i32) {
    %c0_i32 = arith.constant 0 : i32
    %c0_i32_0 = arith.constant 0 : i32
    %c0_i32_1 = arith.constant 0 : i32
    %c0_i32_2 = arith.constant 0 : i32
    return %c0_i32, %c0_i32_0, %c0_i32_1, %arg0 : i32, i32, i32, i32
  }
  func.func @transform_1(%arg0: i32) -> (i32, i32, i32) {
    %c0_i32 = arith.constant 0 : i32
    %c0_i32_0 = arith.constant 0 : i32
    %c0_i32_1 = arith.constant 0 : i32
    return %c0_i32, %c0_i32_0, %arg0 : i32, i32, i32
  }
  func.func @transform_2(%arg0: i32) -> (i32, i32) {
    %c0_i32 = arith.constant 0 : i32
    %c0_i32_0 = arith.constant 0 : i32
    return %c0_i32, %arg0 : i32, i32
  }
  func.func @transform_3(%arg0: i32) -> (i32, i32) {
    %c0_i32 = arith.constant 0 : i32
    %c0_i32_0 = arith.constant 0 : i32
    return %c0_i32, %arg0 : i32, i32
  }
  func.func @transform_4(%arg0: i32) -> (i32, i32) {
    %c0_i32 = arith.constant 0 : i32
    %c0_i32_0 = arith.constant 0 : i32
    return %c0_i32, %arg0 : i32, i32
  }
}

</mosaic_0001>

<llo_original>
// kernel: tpu_custom_call.1
$region0: #{tpu_custom_call.1}
  #allocation0 [shape = 'u32[]', space=smem, size = 0x4, offset = 0x4, fixed_abs, tag = 'smem constant byte address 0x4 - core index']
  #allocation1 [shape = 'u32[144,128]{1,0:T(1,128)}', space=vmem, size = 0x12000, scoped, tag = 'internal scratch']
  #allocation2 [shape = 'f32[2,10,10,128]{3,2,1,0:T(8,128)}', space=vmem, size = 0x28000, scoped, tag = 'scratch operand']
  %s0 = inlined_call_operand.hbm [shape: f32[2,8,8,256], index: 0, kind: input, shape index: {}]
  %s1 = inlined_call_operand.hbm [shape: f32[3,3,256], index: 1, kind: input, shape index: {}]
  %s2 = inlined_call_operand.vmem [shape: f32[1,256], index: 2, kind: input, shape index: {}]
  %s3 = inlined_call_operand.vmem [shape: f32[1,256], index: 3, kind: input, shape index: {}]
  %s4 = inlined_call_operand.hbm [shape: f32[128,256], index: 4, kind: output, shape index: {}]
  %s5 = sld [smem:[#allocation0]]
  $region57: #{tpu_custom_call.1} parent=0
    _
  %s7 = ssub.s32 1, %s5
  %s8 = scalar_select 0, %s7, %s5
  $region1: #{tpu_custom_call.1} parent=0
    #allocation3 [shape = 'u8[131072]{0}', space=vmem, size = 0x20000, scoped, tag = 'input window, operand 0']
    #allocation4 [shape = 's32[2]{0}', space=sflag, size = 0x8, scoped, tag = 'scoped memory for tpu_custom_call.1']
    #allocation5 [shape = 's32[2]{0}', space=sflag, size = 0x8, scoped, tag = 'scoped memory for tpu_custom_call.1']
    #allocation6 [shape = 'u8[12288]{0}', space=vmem, size = 0x3000, scoped, tag = 'input window, operand 1']
    #allocation7 [shape = 's32[2]{0}', space=sflag, size = 0x8, scoped, tag = 'scoped memory for tpu_custom_call.1']
    #allocation8 [shape = 'u8[131072]{0}', space=vmem, size = 0x20000, scoped, tag = 'output window, operand 0']
    %9 = vsyncpa [#allocation4], 0
    %s10 = scalar_lea.sflag [#allocation4], 1
    %11 = vsyncpa %s10, 0
    %12 = vsyncpa [#allocation7], 0
    %s13 = scalar_lea.sflag [#allocation7], 1
    %14 = vsyncpa %s13, 0
    %15 = vsyncpa [#allocation5], 0
    %s16 = scalar_lea.sflag [#allocation5], 1
    %17 = vsyncpa %s16, 0
    loop: start=0, step=1, limit=4
    $region2: #{tpu_custom_call.1} parent=1 // loop_pre_header
      _
    $region3: #{tpu_custom_call.1} parent=1 // loop_header
      %s19 = sphi 0, %s23
      %p20 = scmp.ge.s32.totalorder %s19, 4
      %s29 = sphi 0, %s31
      %s32 = sphi 0, %s29
      %s33 = sphi 0, %s32
      %s49 = sphi 0, %s33
      %s55 = sphi 0, %s57
      %s58 = sphi 0, %s55
      %s59 = sphi 0, %s58
      %s75 = sphi 0, %s59
      %s81 = sphi 0, %s83
      %s84 = sphi 0, %s81
      %s85 = sphi 0, %s84
      %s101 = sphi 0, %s85
      %s107 = sphi 0, %s109
      %s110 = sphi 0, %s107
      %s111 = sphi 0, %s110
      %s127 = sphi 0, %s111
      %s133 = sphi 0, %s135
      %s136 = sphi 0, %s133
      %s137 = sphi 0, %s136
      %s153 = sphi 0, %s137
    $region4: #{tpu_custom_call.1} parent=1 // loop_header_branch
      %22 = sbr.rel (%p20) target = $region8
    $region5: #{tpu_custom_call.1} parent=1 // loop_body
      %s24 = ssub.s32 %s19, 1
      %s25 = ssub.s32 %s19, 2
      %s26 = sadd.s32 %s19, 1
      %s27 = ssub.s32 %s19, %s26
      %p28 = scmp.eq.s32.totalorder %s27, 0
      %s30 = sadd.s32 %s29, 1
      %s31 = scalar_select %p28, %s29, %s30
      %p34 = pneg %p28
      %p35 = scmp.eq.s32.totalorder %s19, 1
      %p36 = por %p34, %p35
      %p37 = scmp.ne.s32.totalorder %s29, %s32
      %p38 = scmp.eq.s32.totalorder %s19, 0
      %p39 = por %p37, %p38
      %p40 = scmp.ne.s32.totalorder %s29, %s32
      %p41 = scmp.eq.s32.totalorder %s24, 1
      %p42 = por %p40, %p41
      %p43 = scmp.ne.s32.totalorder %s32, %s33
      %p44 = scmp.eq.s32.totalorder %s24, 0
      %p45 = por %p43, %p44
      %p46 = scmp.ne.s32.totalorder %s32, %s33
      %p47 = scmp.eq.s32.totalorder %s25, 1
      %p48 = por %p46, %p47
      %p50 = scmp.ne.s32.totalorder %s33, %s49
      %p51 = scmp.eq.s32.totalorder %s25, 0
      %p52 = por %p50, %p51
      %s53 = ssub.s32 %s19, %s26
      %p54 = scmp.eq.s32.totalorder %s53, 0
      %s56 = sadd.s32 %s55, 1
      %s57 = scalar_select %p54, %s55, %s56
      %p60 = pneg %p54
      %p61 = scmp.eq.s32.totalorder %s19, 1
      %p62 = por %p60, %p61
      %p63 = scmp.ne.s32.totalorder %s55, %s58
      %p64 = scmp.eq.s32.totalorder %s19, 0
      %p65 = por %p63, %p64
      %p66 = scmp.ne.s32.totalorder %s55, %s58
      %p67 = scmp.eq.s32.totalorder %s24, 1
      %p68 = por %p66, %p67
      %p69 = scmp.ne.s32.totalorder %s58, %s59
      %p70 = scmp.eq.s32.totalorder %s24, 0
      %p71 = por %p69, %p70
      %p72 = scmp.ne.s32.totalorder %s58, %s59
      %p73 = scmp.eq.s32.totalorder %s25, 1
      %p74 = por %p72, %p73
      %p76 = scmp.ne.s32.totalorder %s59, %s75
      %p77 = scmp.eq.s32.totalorder %s25, 0
      %p78 = por %p76, %p77
      %s79 = ssub.s32 %s19, %s26
      %p80 = scmp.eq.s32.totalorder %s79, 0
      %s82 = sadd.s32 %s81, 1
      %s83 = scalar_select %p80, %s81, %s82
      %p86 = pneg %p80
      %p87 = scmp.eq.s32.totalorder %s19, 1
      %p88 = por %p86, %p87
      %p89 = scmp.ne.s32.totalorder %s81, %s84
      %p90 = scmp.eq.s32.totalorder %s19, 0
      %p91 = por %p89, %p90
      %p92 = scmp.ne.s32.totalorder %s81, %s84
      %p93 = scmp.eq.s32.totalorder %s24, 1
      %p94 = por %p92, %p93
      %p95 = scmp.ne.s32.totalorder %s84, %s85
      %p96 = scmp.eq.s32.totalorder %s24, 0
      %p97 = por %p95, %p96
      %p98 = scmp.ne.s32.totalorder %s84, %s85
      %p99 = scmp.eq.s32.totalorder %s25, 1
      %p100 = por %p98, %p99
      %p102 = scmp.ne.s32.totalorder %s85, %s101
      %p103 = scmp.eq.s32.totalorder %s25, 0
      %p104 = por %p102, %p103
      %s105 = ssub.s32 %s19, %s26
      %p106 = scmp.eq.s32.totalorder %s105, 0
      %s108 = sadd.s32 %s107, 1
      %s109 = scalar_select %p106, %s107, %s108
      %p112 = pneg %p106
      %p113 = scmp.eq.s32.totalorder %s19, 1
      %p114 = por %p112, %p113
      %p115 = scmp.ne.s32.totalorder %s107, %s110
      %p116 = scmp.eq.s32.totalorder %s19, 0
      %p117 = por %p115, %p116
      %p118 = scmp.ne.s32.totalorder %s107, %s110
      %p119 = scmp.eq.s32.totalorder %s24, 1
      %p120 = por %p118, %p119
      %p121 = scmp.ne.s32.totalorder %s110, %s111
      %p122 = scmp.eq.s32.totalorder %s24, 0
      %p123 = por %p121, %p122
      %p124 = scmp.ne.s32.totalorder %s110, %s111
      %p125 = scmp.eq.s32.totalorder %s25, 1
      %p126 = por %p124, %p125
      %p128 = scmp.ne.s32.totalorder %s111, %s127
      %p129 = scmp.eq.s32.totalorder %s25, 0
      %p130 = por %p128, %p129
      %s131 = ssub.s32 %s19, %s26
      %p132 = scmp.eq.s32.totalorder %s131, 0
      %s134 = sadd.s32 %s133, 1
      %s135 = scalar_select %p132, %s133, %s134
      %p138 = pneg %p132
      %p139 = scmp.eq.s32.totalorder %s19, 1
      %p140 = por %p138, %p139
      %p141 = scmp.ne.s32.totalorder %s133, %s136
      %p142 = scmp.eq.s32.totalorder %s19, 0
      %p143 = por %p141, %p142
      %p144 = scmp.ne.s32.totalorder %s133, %s136
      %p145 = scmp.eq.s32.totalorder %s24, 1
      %p146 = por %p144, %p145
      %p147 = scmp.ne.s32.totalorder %s136, %s137
      %p148 = scmp.eq.s32.totalorder %s24, 0
      %p149 = por %p147, %p148
      %p150 = scmp.ne.s32.totalorder %s136, %s137
      %p151 = scmp.eq.s32.totalorder %s25, 1
      %p152 = por %p150, %p151
      %p154 = scmp.ne.s32.totalorder %s137, %s153
      %p155 = scmp.eq.s32.totalorder %s25, 0
      %p156 = por %p154, %p155
      %p157 = scmp.le.s32.totalorder 1, %s19
      %p158 = scmp.lt.s32.totalorder %s19, 3
      %p159 = pnand %p157, %p158
      %p160 = pneg %p159
      // Predicated region
      $region9: #{tpu_custom_call.1} parent=5 // pred_check
        _
      $region10: #{tpu_custom_call.1} parent=5 // pred_check_branch
        %162 = sbr.rel (%p159) target = $region12
      $region11: #{tpu_custom_call.1} parent=5 // pred_region
        %s163 = ssub.s32 %s19, 1
      $region12: #{tpu_custom_call.1} parent=5 // pred_fallthru
        _
      %p164 = scmp.lt.s32.totalorder %s19, 2
      // Predicated region
      $region13: #{tpu_custom_call.1} parent=5 // pred_check
        %p165 = pneg %p164
      $region14: #{tpu_custom_call.1} parent=5 // pred_check_branch
        %167 = sbr.rel (%p165) target = $region16
      $region15: #{tpu_custom_call.1} parent=5 // pred_region
        // Predicated region
        $region17: #{tpu_custom_call.1} parent=15 // pred_check
          %p168 = pneg %p39
        $region18: #{tpu_custom_call.1} parent=15 // pred_check_branch
          %170 = sbr.rel (%p168) target = $region20
        $region19: #{tpu_custom_call.1} parent=15 // pred_region
          %s171 = sand.u32 %s29, 1
          %s172 = scalar_lea.sflag [#allocation4], %s171
          %s173 = sand.u32 %s29, 1
          %s174 = smul.addr %s173, 128
          %s175 = scalar_lea.vmem [#allocation3], %s174
          %s177 = ssub.s32 2048, 2048
          %178 = vsyncadd %s172, %s177
          %s179 = smul.addr %s19, 128
          %s180 = scalar_lea.hbm %s0, %s179
          %s181 = sshll.u32 %s175, 4
          %s182 = int_to_ptr.vmem [resolvable:$true] %s181
          %187 = dma.hbm_to_vmem [thread:$0]  %s180, 2048, %s182, %s172, 256, 128, 8
        $region20: #{tpu_custom_call.1} parent=15 // pred_fallthru
          _
        // Predicated region
        $region21: #{tpu_custom_call.1} parent=15 // pred_check
          %p188 = pneg %p65
        $region22: #{tpu_custom_call.1} parent=15 // pred_check_branch
          %190 = sbr.rel (%p188) target = $region24
        $region23: #{tpu_custom_call.1} parent=15 // pred_region
          %s191 = sand.u32 %s55, 1
          %s192 = scalar_lea.sflag [#allocation7], %s191
          %s193 = sand.u32 %s55, 1
          %s194 = smul.addr %s193, 12
          %s195 = scalar_lea.vmem [#allocation6], %s194
          %s197 = ssub.s32 192, 192
          %198 = vsyncadd %s192, %s197
          %s199 = smul.addr %s19, 64
          %s200 = scalar_lea.hbm %s1, %s199
          %s201 = sshll.u32 %s195, 4
          %s202 = int_to_ptr.vmem [resolvable:$true] %s201
          %207 = dma.hbm_to_vmem [thread:$0]  %s200, 192, %s202, %s192, 128, 64, 4
        $region24: #{tpu_custom_call.1} parent=15 // pred_fallthru
          _
        // Predicated region
        $region25: #{tpu_custom_call.1} parent=15 // pred_check
          %p208 = pneg %p91
        $region26: #{tpu_custom_call.1} parent=15 // pred_check_branch
          %210 = sbr.rel (%p208) target = $region28
        $region27: #{tpu_custom_call.1} parent=15 // pred_region
          %p211 = scmp.lt.s32.totalorder %s19, 1
          %s212 = scalar_select %p211, %s19, 1
          %s213 = scalar_lea.vmem %s2, %s212
        $region28: #{tpu_custom_call.1} parent=15 // pred_fallthru
          _
        // Predicated region
        $region29: #{tpu_custom_call.1} parent=15 // pred_check
          %p214 = pneg %p117
        $region30: #{tpu_custom_call.1} parent=15 // pred_check_branch
          %216 = sbr.rel (%p214) target = $region32
        $region31: #{tpu_custom_call.1} parent=15 // pred_region
          %p217 = scmp.lt.s32.totalorder %s19, 1
          %s218 = scalar_select %p217, %s19, 1
          %s219 = scalar_lea.vmem %s3, %s218
        $region32: #{tpu_custom_call.1} parent=15 // pred_fallthru
          _
      $region16: #{tpu_custom_call.1} parent=5 // pred_fallthru
        _
      %p220 = scmp.le.s32.totalorder 1, %s19
      %p221 = scmp.lt.s32.totalorder %s19, 3
      %p222 = pnand %p220, %p221
      %p223 = pneg %p222
      // Predicated region
      $region33: #{tpu_custom_call.1} parent=5 // pred_check
        _
      $region34: #{tpu_custom_call.1} parent=5 // pred_check_branch
        %225 = sbr.rel (%p222) target = $region36
      $region35: #{tpu_custom_call.1} parent=5 // pred_region
        %s226 = ssub.s32 %s19, 1
        %s227 = sand.u32 %s32, 1
        %s228 = scalar_lea.sflag [#allocation4], %s227
        %s229 = sand.u32 %s32, 1
        %s230 = smul.addr %s229, 128
        %s231 = scalar_lea.vmem [#allocation3], %s230
        // Predicated region
        $region37: #{tpu_custom_call.1} parent=35 // pred_check
          %p232 = pneg %p45
        $region38: #{tpu_custom_call.1} parent=35 // pred_check_branch
          %234 = sbr.rel (%p232) target = $region40
        $region39: #{tpu_custom_call.1} parent=35 // pred_region
          %235 = dma.done %s228, 2048
        $region40: #{tpu_custom_call.1} parent=35 // pred_fallthru
          _
        %s236 = sand.u32 %s58, 1
        %s237 = scalar_lea.sflag [#allocation7], %s236
        %s238 = sand.u32 %s58, 1
        %s239 = smul.addr %s238, 12
        %s240 = scalar_lea.vmem [#allocation6], %s239
        // Predicated region
        $region41: #{tpu_custom_call.1} parent=35 // pred_check
          %p241 = pneg %p71
        $region42: #{tpu_custom_call.1} parent=35 // pred_check_branch
          %243 = sbr.rel (%p241) target = $region44
        $region43: #{tpu_custom_call.1} parent=35 // pred_region
          %244 = dma.done %s237, 192
        $region44: #{tpu_custom_call.1} parent=35 // pred_fallthru
          _
        %s245 = sand.u32 %s32, 1
        %s246 = scalar_lea.sflag [#allocation4], %s245
        %s247 = sand.u32 %s32, 1
        %s248 = smul.addr %s247, 128
        %s249 = scalar_lea.vmem [#allocation3], %s248
        %p250 = pneg %p45
        %p251 = pneg %p42
        %s252 = sand.u32 %s58, 1
        %s253 = scalar_lea.sflag [#allocation7], %s252
        %s254 = sand.u32 %s58, 1
        %s255 = smul.addr %s254, 12
        %s256 = scalar_lea.vmem [#allocation6], %s255
        %p257 = pneg %p71
        %p258 = pneg %p68
        %p259 = scmp.lt.s32.totalorder %s24, 1
        %s260 = scalar_select %p259, %s24, 1
        %s261 = scalar_lea.vmem %s2, %s260
        %p262 = pneg %p97
        %p263 = pneg %p94
        %p264 = scmp.lt.s32.totalorder %s24, 1
        %s265 = scalar_select %p264, %s24, 1
        %s266 = scalar_lea.vmem %s3, %s265
        %p267 = pneg %p123
        %p268 = pneg %p120
        %p269 = pneg %p149
        %p270 = pneg %p146
        %s271 = sand.u32 %s136, 1
        %s272 = scalar_lea.sflag [#allocation5], %s271
        %s273 = sand.u32 %s136, 1
        %s274 = smul.addr %s273, 128
        %s275 = scalar_lea.vmem [#allocation8], %s274
        %p276 = scmp.lt.s32.totalorder %s24, 1
        %s277 = scalar_select %p276, %s24, 1
        %s278 = scalar_lea.vmem %s2, %s277
        %p279 = scmp.lt.s32.totalorder %s24, 1
        %s280 = scalar_select %p279, %s24, 1
        %s281 = scalar_lea.vmem %s3, %s280
        %282 = vst [vmem:[#allocation2] sm:$0xff] 0.0
        %283 = vst [vmem:[#allocation2 + $0x8] sm:$0x3] 0.0
        %284 = vst [vmem:[#allocation2 + $0x10] sm:$0xff] 0.0
        %285 = vst [vmem:[#allocation2 + $0x18] sm:$0x3] 0.0
        %286 = vst [vmem:[#allocation2 + $0x20] sm:$0xff] 0.0
        %287 = vst [vmem:[#allocation2 + $0x28] sm:$0x3] 0.0
        %288 = vst [vmem:[#allocation2 + $0x30] sm:$0xff] 0.0
        %289 = vst [vmem:[#allocation2 + $0x38] sm:$0x3] 0.0
        %290 = vst [vmem:[#allocation2 + $0x40] sm:$0xff] 0.0
        %291 = vst [vmem:[#allocation2 + $0x48] sm:$0x3] 0.0
        %292 = vst [vmem:[#allocation2 + $0x50] sm:$0xff] 0.0
        %293 = vst [vmem:[#allocation2 + $0x58] sm:$0x3] 0.0
        %294 = vst [vmem:[#allocation2 + $0x60] sm:$0xff] 0.0
        %295 = vst [vmem:[#allocation2 + $0x68] sm:$0x3] 0.0
        %296 = vst [vmem:[#allocation2 + $0x70] sm:$0xff] 0.0
        %297 = vst [vmem:[#allocation2 + $0x78] sm:$0x3] 0.0
        %298 = vst [vmem:[#allocation2 + $0x80] sm:$0xff] 0.0
        %299 = vst [vmem:[#allocation2 + $0x88] sm:$0x3] 0.0
        %300 = vst [vmem:[#allocation2 + $0x90] sm:$0xff] 0.0
        %301 = vst [vmem:[#allocation2 + $0x98] sm:$0x3] 0.0
        %302 = vst [vmem:[#allocation2 + $0xa0] sm:$0xff] 0.0
        %303 = vst [vmem:[#allocation2 + $0xa8] sm:$0x3] 0.0
        %304 = vst [vmem:[#allocation2 + $0xb0] sm:$0xff] 0.0
        %305 = vst [vmem:[#allocation2 + $0xb8] sm:$0x3] 0.0
        %306 = vst [vmem:[#allocation2 + $0xc0] sm:$0xff] 0.0
        %307 = vst [vmem:[#allocation2 + $0xc8] sm:$0x3] 0.0
        %308 = vst [vmem:[#allocation2 + $0xd0] sm:$0xff] 0.0
        %309 = vst [vmem:[#allocation2 + $0xd8] sm:$0x3] 0.0
        %310 = vst [vmem:[#allocation2 + $0xe0] sm:$0xff] 0.0
        %311 = vst [vmem:[#allocation2 + $0xe8] sm:$0x3] 0.0
        %312 = vst [vmem:[#allocation2 + $0xf0] sm:$0xff] 0.0
        %313 = vst [vmem:[#allocation2 + $0xf8] sm:$0x3] 0.0
        %314 = vst [vmem:[#allocation2 + $0x100] sm:$0xff] 0.0
        %315 = vst [vmem:[#allocation2 + $0x108] sm:$0x3] 0.0
        %316 = vst [vmem:[#allocation2 + $0x110] sm:$0xff] 0.0
        %317 = vst [vmem:[#allocation2 + $0x118] sm:$0x3] 0.0
        %318 = vst [vmem:[#allocation2 + $0x120] sm:$0xff] 0.0
        %319 = vst [vmem:[#allocation2 + $0x128] sm:$0x3] 0.0
        %320 = vst [vmem:[#allocation2 + $0x130] sm:$0xff] 0.0
        %321 = vst [vmem:[#allocation2 + $0x138] sm:$0x3] 0.0
        %v322 = vld [vmem:[%s231] sm:$0xff]
        %v323 = vld [vmem:[%s231 + $0x8] sm:$0xff]
        %v324 = vld [vmem:[%s231 + $0x10] sm:$0xff]
        %v325 = vld [vmem:[%s231 + $0x18] sm:$0xff]
        %v326 = vld [vmem:[%s231 + $0x20] sm:$0xff]
        %v327 = vld [vmem:[%s231 + $0x28] sm:$0xff]
        %v328 = vld [vmem:[%s231 + $0x30] sm:$0xff]
        %v329 = vld [vmem:[%s231 + $0x38] sm:$0xff]
        %v330 = vld [vmem:[%s231 + $0x40] sm:$0xff]
        %v331 = vld [vmem:[%s231 + $0x48] sm:$0xff]
        %v332 = vld [vmem:[%s231 + $0x50] sm:$0xff]
        %v333 = vld [vmem:[%s231 + $0x58] sm:$0xff]
        %v334 = vld [vmem:[%s231 + $0x60] sm:$0xff]
        %v335 = vld [vmem:[%s231 + $0x68] sm:$0xff]
        %v336 = vld [vmem:[%s231 + $0x70] sm:$0xff]
        %v337 = vld [vmem:[%s231 + $0x78] sm:$0xff]
        %s338 = scalar_lea.vmem [#allocation2], 16
        %339 = vst [vmem:[%s338 + $0x1] sm:$0xff] %v322
        %340 = vst [vmem:[%s338 + $0x11] sm:$0xff] %v323
        %341 = vst [vmem:[%s338 + $0x21] sm:$0xff] %v324
        %342 = vst [vmem:[%s338 + $0x31] sm:$0xff] %v325
        %343 = vst [vmem:[%s338 + $0x41] sm:$0xff] %v326
        %344 = vst [vmem:[%s338 + $0x51] sm:$0xff] %v327
        %345 = vst [vmem:[%s338 + $0x61] sm:$0xff] %v328
        %346 = vst [vmem:[%s338 + $0x71] sm:$0xff] %v329
        %347 = vst [vmem:[%s338 + $0xa1] sm:$0xff] %v330
        %348 = vst [vmem:[%s338 + $0xb1] sm:$0xff] %v331
        %349 = vst [vmem:[%s338 + $0xc1] sm:$0xff] %v332
        %350 = vst [vmem:[%s338 + $0xd1] sm:$0xff] %v333
        %351 = vst [vmem:[%s338 + $0xe1] sm:$0xff] %v334
        %352 = vst [vmem:[%s338 + $0xf1] sm:$0xff] %v335
        %353 = vst [vmem:[%s338 + $0x101] sm:$0xff] %v336
        %354 = vst [vmem:[%s338 + $0x111] sm:$0xff] %v337
        %v355 = vld [vmem:[%s240] sm:$0x7]
        %v356 = vld [vmem:[%s240 + $0x4] sm:$0x7]
        %v357 = vld [vmem:[%s240 + $0x8] sm:$0x7]
        %v358 = vld [vmem:[#allocation2] sm:$0xff]
        %v359 = vld [vmem:[#allocation2 + $0x10] sm:$0xff]
        %v360 = vld [vmem:[#allocation2 + $0x20] sm:$0xff]
        %v361 = vld [vmem:[#allocation2 + $0x30] sm:$0xff]
        %v362 = vld [vmem:[#allocation2 + $0x40] sm:$0xff]
        %v363 = vld [vmem:[#allocation2 + $0x50] sm:$0xff]
        %v364 = vld [vmem:[#allocation2 + $0x60] sm:$0xff]
        %v365 = vld [vmem:[#allocation2 + $0x70] sm:$0xff]
        %v366 = vld [vmem:[#allocation2 + $0x80] sm:$0xff]
        %v367 = vld [vmem:[#allocation2 + $0x90] sm:$0xff]
        %v368 = vld [vmem:[#allocation2 + $0xa0] sm:$0xff]
        %v369 = vld [vmem:[#allocation2 + $0xb0] sm:$0xff]
        %v370 = vld [vmem:[#allocation2 + $0xc0] sm:$0xff]
        %v371 = vld [vmem:[#allocation2 + $0xd0] sm:$0xff]
        %v372 = vld [vmem:[#allocation2 + $0xe0] sm:$0xff]
        %v373 = vld [vmem:[#allocation2 + $0xf0] sm:$0xff]
        %v374 = vld [vmem:[#allocation2 + $0x100] sm:$0xff]
        %v375 = vld [vmem:[#allocation2 + $0x110] sm:$0xff]
        %v376 = vld [vmem:[#allocation2 + $0x120] sm:$0xff]
        %v377 = vld [vmem:[#allocation2 + $0x130] sm:$0xff]
        %v378 = vld [vmem:[#allocation2 + $0x1] sm:$0xff]
        %v379 = vld [vmem:[#allocation2 + $0x11] sm:$0xff]
        %v380 = vld [vmem:[#allocation2 + $0x21] sm:$0xff]
        %v381 = vld [vmem:[#allocation2 + $0x31] sm:$0xff]
        %v382 = vld [vmem:[#allocation2 + $0x41] sm:$0xff]
        %v383 = vld [vmem:[#allocation2 + $0x51] sm:$0xff]
        %v384 = vld [vmem:[#allocation2 + $0x61] sm:$0xff]
        %v385 = vld [vmem:[#allocation2 + $0x71] sm:$0xff]
        %v386 = vld [vmem:[#allocation2 + $0x81] sm:$0xff]
        %v387 = vld [vmem:[#allocation2 + $0x91] sm:$0xff]
        %v388 = vld [vmem:[#allocation2 + $0xa1] sm:$0xff]
        %v389 = vld [vmem:[#allocation2 + $0xb1] sm:$0xff]
        %v390 = vld [vmem:[#allocation2 + $0xc1] sm:$0xff]
        %v391 = vld [vmem:[#allocation2 + $0xd1] sm:$0xff]
        %v392 = vld [vmem:[#allocation2 + $0xe1] sm:$0xff]
        %v393 = vld [vmem:[#allocation2 + $0xf1] sm:$0xff]
        %v394 = vld [vmem:[#allocation2 + $0x101] sm:$0xff]
        %v395 = vld [vmem:[#allocation2 + $0x111] sm:$0xff]
        %v396 = vld [vmem:[#allocation2 + $0x121] sm:$0xff]
        %v397 = vld [vmem:[#allocation2 + $0x131] sm:$0xff]
        %v398 = vld [vmem:[#allocation2 + $0x2] sm:$0xff]
        %v399 = vld [vmem:[#allocation2 + $0x12] sm:$0xff]
        %v400 = vld [vmem:[#allocation2 + $0x22] sm:$0xff]
        %v401 = vld [vmem:[#allocation2 + $0x32] sm:$0xff]
        %v402 = vld [vmem:[#allocation2 + $0x42] sm:$0xff]
        %v403 = vld [vmem:[#allocation2 + $0x52] sm:$0xff]
        %v404 = vld [vmem:[#allocation2 + $0x62] sm:$0xff]
        %v405 = vld [vmem:[#allocation2 + $0x72] sm:$0xff]
        %v406 = vld [vmem:[#allocation2 + $0x82] sm:$0xff]
        %v407 = vld [vmem:[#allocation2 + $0x92] sm:$0xff]
        %v408 = vld [vmem:[#allocation2 + $0xa2] sm:$0xff]
        %v409 = vld [vmem:[#allocation2 + $0xb2] sm:$0xff]
        %v410 = vld [vmem:[#allocation2 + $0xc2] sm:$0xff]
        %v411 = vld [vmem:[#allocation2 + $0xd2] sm:$0xff]
        %v412 = vld [vmem:[#allocation2 + $0xe2] sm:$0xff]
        %v413 = vld [vmem:[#allocation2 + $0xf2] sm:$0xff]
        %v414 = vld [vmem:[#allocation2 + $0x102] sm:$0xff]
        %v415 = vld [vmem:[#allocation2 + $0x112] sm:$0xff]
        %v416 = vld [vmem:[#allocation2 + $0x122] sm:$0xff]
        %v417 = vld [vmem:[#allocation2 + $0x132] sm:$0xff]
        %v418 = vlaneseq
        %v419 = vshrl.u32 %v418, 7
        %v420 = vsub.s32 0, %v419
        %v421 = vrot.slane %v355, %v420
        %v422 = vmul.f32 %v358, %v421
        %v423 = vmul.f32 %v359, %v421
        %v424 = vmul.f32 %v360, %v421
        %v425 = vmul.f32 %v361, %v421
        %v426 = vmul.f32 %v362, %v421
        %v427 = vmul.f32 %v363, %v421
        %v428 = vmul.f32 %v364, %v421
        %v429 = vmul.f32 %v365, %v421
        %v430 = vmul.f32 %v368, %v421
        %v431 = vmul.f32 %v369, %v421
        %v432 = vmul.f32 %v370, %v421
        %v433 = vmul.f32 %v371, %v421
        %v434 = vmul.f32 %v372, %v421
        %v435 = vmul.f32 %v373, %v421
        %v436 = vmul.f32 %v374, %v421
        %v437 = vmul.f32 %v375, %v421
        %v438 = vlaneseq
        %v439 = vshrl.u32 %v438, 7
        %v440 = vsub.s32 1, %v439
        %v441 = vrot.slane %v355, %v440
        %v442 = vmul.f32 %v378, %v441
        %v443 = vmul.f32 %v379, %v441
        %v444 = vmul.f32 %v380, %v441
        %v445 = vmul.f32 %v381, %v441
        %v446 = vmul.f32 %v382, %v441
        %v447 = vmul.f32 %v383, %v441
        %v448 = vmul.f32 %v384, %v441
        %v449 = vmul.f32 %v385, %v441
        %v450 = vmul.f32 %v388, %v441
        %v451 = vmul.f32 %v389, %v441
        %v452 = vmul.f32 %v390, %v441
        %v453 = vmul.f32 %v391, %v441
        %v454 = vmul.f32 %v392, %v441
        %v455 = vmul.f32 %v393, %v441
        %v456 = vmul.f32 %v394, %v441
        %v457 = vmul.f32 %v395, %v441
        %v458 = vadd.f32 %v422, %v442
        %v459 = vadd.f32 %v423, %v443
        %v460 = vadd.f32 %v424, %v444
        %v461 = vadd.f32 %v425, %v445
        %v462 = vadd.f32 %v426, %v446
        %v463 = vadd.f32 %v427, %v447
        %v464 = vadd.f32 %v428, %v448
        %v465 = vadd.f32 %v429, %v449
        %v466 = vadd.f32 %v430, %v450
        %v467 = vadd.f32 %v431, %v451
        %v468 = vadd.f32 %v432, %v452
        %v469 = vadd.f32 %v433, %v453
        %v470 = vadd.f32 %v434, %v454
        %v471 = vadd.f32 %v435, %v455
        %v472 = vadd.f32 %v436, %v456
        %v473 = vadd.f32 %v437, %v457
        %v474 = vlaneseq
        %v475 = vshrl.u32 %v474, 7
        %v476 = vsub.s32 2, %v475
        %v477 = vrot.slane %v355, %v476
        %v478 = vmul.f32 %v398, %v477
        %v479 = vmul.f32 %v399, %v477
        %v480 = vmul.f32 %v400, %v477
        %v481 = vmul.f32 %v401, %v477
        %v482 = vmul.f32 %v402, %v477
        %v483 = vmul.f32 %v403, %v477
        %v484 = vmul.f32 %v404, %v477
        %v485 = vmul.f32 %v405, %v477
        %v486 = vmul.f32 %v408, %v477
        %v487 = vmul.f32 %v409, %v477
        %v488 = vmul.f32 %v410, %v477
        %v489 = vmul.f32 %v411, %v477
        %v490 = vmul.f32 %v412, %v477
        %v491 = vmul.f32 %v413, %v477
        %v492 = vmul.f32 %v414, %v477
        %v493 = vmul.f32 %v415, %v477
        %v494 = vadd.f32 %v458, %v478
        %v495 = vadd.f32 %v459, %v479
        %v496 = vadd.f32 %v460, %v480
        %v497 = vadd.f32 %v461, %v481
        %v498 = vadd.f32 %v462, %v482
        %v499 = vadd.f32 %v463, %v483
        %v500 = vadd.f32 %v464, %v484
        %v501 = vadd.f32 %v465, %v485
        %v502 = vadd.f32 %v466, %v486
        %v503 = vadd.f32 %v467, %v487
        %v504 = vadd.f32 %v468, %v488
        %v505 = vadd.f32 %v469, %v489
        %v506 = vadd.f32 %v470, %v490
        %v507 = vadd.f32 %v471, %v491
        %v508 = vadd.f32 %v472, %v492
        %v509 = vadd.f32 %v473, %v493
        %v510 = vlaneseq
        %v511 = vshrl.u32 %v510, 7
        %v512 = vsub.s32 0, %v511
        %v513 = vrot.slane %v356, %v512
        %v514 = vmul.f32 %v359, %v513
        %v515 = vmul.f32 %v360, %v513
        %v516 = vmul.f32 %v361, %v513
        %v517 = vmul.f32 %v362, %v513
        %v518 = vmul.f32 %v363, %v513
        %v519 = vmul.f32 %v364, %v513
        %v520 = vmul.f32 %v365, %v513
        %v521 = vmul.f32 %v366, %v513
        %v522 = vmul.f32 %v369, %v513
        %v523 = vmul.f32 %v370, %v513
        %v524 = vmul.f32 %v371, %v513
        %v525 = vmul.f32 %v372, %v513
        %v526 = vmul.f32 %v373, %v513
        %v527 = vmul.f32 %v374, %v513
        %v528 = vmul.f32 %v375, %v513
        %v529 = vmul.f32 %v376, %v513
        %v530 = vadd.f32 %v494, %v514
        %v531 = vadd.f32 %v495, %v515
        %v532 = vadd.f32 %v496, %v516
        %v533 = vadd.f32 %v497, %v517
        %v534 = vadd.f32 %v498, %v518
        %v535 = vadd.f32 %v499, %v519
        %v536 = vadd.f32 %v500, %v520
        %v537 = vadd.f32 %v501, %v521
        %v538 = vadd.f32 %v502, %v522
        %v539 = vadd.f32 %v503, %v523
        %v540 = vadd.f32 %v504, %v524
        %v541 = vadd.f32 %v505, %v525
        %v542 = vadd.f32 %v506, %v526
        %v543 = vadd.f32 %v507, %v527
        %v544 = vadd.f32 %v508, %v528
        %v545 = vadd.f32 %v509, %v529
        %v546 = vlaneseq
        %v547 = vshrl.u32 %v546, 7
        %v548 = vsub.s32 1, %v547
        %v549 = vrot.slane %v356, %v548
        %v550 = vmul.f32 %v379, %v549
        %v551 = vmul.f32 %v380, %v549
        %v552 = vmul.f32 %v381, %v549
        %v553 = vmul.f32 %v382, %v549
        %v554 = vmul.f32 %v383, %v549
        %v555 = vmul.f32 %v384, %v549
        %v556 = vmul.f32 %v385, %v549
        %v557 = vmul.f32 %v386, %v549
        %v558 = vmul.f32 %v389, %v549
        %v559 = vmul.f32 %v390, %v549
        %v560 = vmul.f32 %v391, %v549
        %v561 = vmul.f32 %v392, %v549
        %v562 = vmul.f32 %v393, %v549
        %v563 = vmul.f32 %v394, %v549
        %v564 = vmul.f32 %v395, %v549
        %v565 = vmul.f32 %v396, %v549
        %v566 = vadd.f32 %v530, %v550
        %v567 = vadd.f32 %v531, %v551
        %v568 = vadd.f32 %v532, %v552
        %v569 = vadd.f32 %v533, %v553
        %v570 = vadd.f32 %v534, %v554
        %v571 = vadd.f32 %v535, %v555
        %v572 = vadd.f32 %v536, %v556
        %v573 = vadd.f32 %v537, %v557
        %v574 = vadd.f32 %v538, %v558
        %v575 = vadd.f32 %v539, %v559
        %v576 = vadd.f32 %v540, %v560
        %v577 = vadd.f32 %v541, %v561
        %v578 = vadd.f32 %v542, %v562
        %v579 = vadd.f32 %v543, %v563
        %v580 = vadd.f32 %v544, %v564
        %v581 = vadd.f32 %v545, %v565
        %v582 = vlaneseq
        %v583 = vshrl.u32 %v582, 7
        %v584 = vsub.s32 2, %v583
        %v585 = vrot.slane %v356, %v584
        %v586 = vmul.f32 %v399, %v585
        %v587 = vmul.f32 %v400, %v585
        %v588 = vmul.f32 %v401, %v585
        %v589 = vmul.f32 %v402, %v585
        %v590 = vmul.f32 %v403, %v585
        %v591 = vmul.f32 %v404, %v585
        %v592 = vmul.f32 %v405, %v585
        %v593 = vmul.f32 %v406, %v585
        %v594 = vmul.f32 %v409, %v585
        %v595 = vmul.f32 %v410, %v585
        %v596 = vmul.f32 %v411, %v585
        %v597 = vmul.f32 %v412, %v585
        %v598 = vmul.f32 %v413, %v585
        %v599 = vmul.f32 %v414, %v585
        %v600 = vmul.f32 %v415, %v585
        %v601 = vmul.f32 %v416, %v585
        %v602 = vadd.f32 %v566, %v586
        %v603 = vadd.f32 %v567, %v587
        %v604 = vadd.f32 %v568, %v588
        %v605 = vadd.f32 %v569, %v589
        %v606 = vadd.f32 %v570, %v590
        %v607 = vadd.f32 %v571, %v591
        %v608 = vadd.f32 %v572, %v592
        %v609 = vadd.f32 %v573, %v593
        %v610 = vadd.f32 %v574, %v594
        %v611 = vadd.f32 %v575, %v595
        %v612 = vadd.f32 %v576, %v596
        %v613 = vadd.f32 %v577, %v597
        %v614 = vadd.f32 %v578, %v598
        %v615 = vadd.f32 %v579, %v599
        %v616 = vadd.f32 %v580, %v600
        %v617 = vadd.f32 %v581, %v601
        %v618 = vlaneseq
        %v619 = vshrl.u32 %v618, 7
        %v620 = vsub.s32 0, %v619
        %v621 = vrot.slane %v357, %v620
        %v622 = vmul.f32 %v360, %v621
        %v623 = vmul.f32 %v361, %v621
        %v624 = vmul.f32 %v362, %v621
        %v625 = vmul.f32 %v363, %v621
        %v626 = vmul.f32 %v364, %v621
        %v627 = vmul.f32 %v365, %v621
        %v628 = vmul.f32 %v366, %v621
        %v629 = vmul.f32 %v367, %v621
        %v630 = vmul.f32 %v370, %v621
        %v631 = vmul.f32 %v371, %v621
        %v632 = vmul.f32 %v372, %v621
        %v633 = vmul.f32 %v373, %v621
        %v634 = vmul.f32 %v374, %v621
        %v635 = vmul.f32 %v375, %v621
        %v636 = vmul.f32 %v376, %v621
        %v637 = vmul.f32 %v377, %v621
        %v638 = vadd.f32 %v602, %v622
        %v639 = vadd.f32 %v603, %v623
        %v640 = vadd.f32 %v604, %v624
        %v641 = vadd.f32 %v605, %v625
        %v642 = vadd.f32 %v606, %v626
        %v643 = vadd.f32 %v607, %v627
        %v644 = vadd.f32 %v608, %v628
        %v645 = vadd.f32 %v609, %v629
        %v646 = vadd.f32 %v610, %v630
        %v647 = vadd.f32 %v611, %v631
        %v648 = vadd.f32 %v612, %v632
        %v649 = vadd.f32 %v613, %v633
        %v650 = vadd.f32 %v614, %v634
        %v651 = vadd.f32 %v615, %v635
        %v652 = vadd.f32 %v616, %v636
        %v653 = vadd.f32 %v617, %v637
        %v654 = vlaneseq
        %v655 = vshrl.u32 %v654, 7
        %v656 = vsub.s32 1, %v655
        %v657 = vrot.slane %v357, %v656
        %v658 = vmul.f32 %v380, %v657
        %v659 = vmul.f32 %v381, %v657
        %v660 = vmul.f32 %v382, %v657
        %v661 = vmul.f32 %v383, %v657
        %v662 = vmul.f32 %v384, %v657
        %v663 = vmul.f32 %v385, %v657
        %v664 = vmul.f32 %v386, %v657
        %v665 = vmul.f32 %v387, %v657
        %v666 = vmul.f32 %v390, %v657
        %v667 = vmul.f32 %v391, %v657
        %v668 = vmul.f32 %v392, %v657
        %v669 = vmul.f32 %v393, %v657
        %v670 = vmul.f32 %v394, %v657
        %v671 = vmul.f32 %v395, %v657
        %v672 = vmul.f32 %v396, %v657
        %v673 = vmul.f32 %v397, %v657
        %v674 = vadd.f32 %v638, %v658
        %v675 = vadd.f32 %v639, %v659
        %v676 = vadd.f32 %v640, %v660
        %v677 = vadd.f32 %v641, %v661
        %v678 = vadd.f32 %v642, %v662
        %v679 = vadd.f32 %v643, %v663
        %v680 = vadd.f32 %v644, %v664
        %v681 = vadd.f32 %v645, %v665
        %v682 = vadd.f32 %v646, %v666
        %v683 = vadd.f32 %v647, %v667
        %v684 = vadd.f32 %v648, %v668
        %v685 = vadd.f32 %v649, %v669
        %v686 = vadd.f32 %v650, %v670
        %v687 = vadd.f32 %v651, %v671
        %v688 = vadd.f32 %v652, %v672
        %v689 = vadd.f32 %v653, %v673
        %v690 = vlaneseq
        %v691 = vshrl.u32 %v690, 7
        %v692 = vsub.s32 2, %v691
        %v693 = vrot.slane %v357, %v692
        %v694 = vmul.f32 %v400, %v693
        %v695 = vmul.f32 %v401, %v693
        %v696 = vmul.f32 %v402, %v693
        %v697 = vmul.f32 %v403, %v693
        %v698 = vmul.f32 %v404, %v693
        %v699 = vmul.f32 %v405, %v693
        %v700 = vmul.f32 %v406, %v693
        %v701 = vmul.f32 %v407, %v693
        %v702 = vmul.f32 %v410, %v693
        %v703 = vmul.f32 %v411, %v693
        %v704 = vmul.f32 %v412, %v693
        %v705 = vmul.f32 %v413, %v693
        %v706 = vmul.f32 %v414, %v693
        %v707 = vmul.f32 %v415, %v693
        %v708 = vmul.f32 %v416, %v693
        %v709 = vmul.f32 %v417, %v693
        %v710 = vadd.f32 %v674, %v694
        %v711 = vadd.f32 %v675, %v695
        %v712 = vadd.f32 %v676, %v696
        %v713 = vadd.f32 %v677, %v697
        %v714 = vadd.f32 %v678, %v698
        %v715 = vadd.f32 %v679, %v699
        %v716 = vadd.f32 %v680, %v700
        %v717 = vadd.f32 %v681, %v701
        %v718 = vadd.f32 %v682, %v702
        %v719 = vadd.f32 %v683, %v703
        %v720 = vadd.f32 %v684, %v704
        %v721 = vadd.f32 %v685, %v705
        %v722 = vadd.f32 %v686, %v706
        %v723 = vadd.f32 %v687, %v707
        %v724 = vadd.f32 %v688, %v708
        %v725 = vadd.f32 %v689, %v709
        %v726 = vadd.f32 %v710, %v711
        %v727 = vadd.f32 %v726, %v712
        %v728 = vadd.f32 %v727, %v713
        %v729 = vadd.f32 %v728, %v714
        %v730 = vadd.f32 %v729, %v715
        %v731 = vadd.f32 %v730, %v716
        %v732 = vadd.f32 %v731, %v717
        %v733 = vadd.f32 %v732, %v718
        %v734 = vadd.f32 %v733, %v719
        %v735 = vadd.f32 %v734, %v720
        %v736 = vadd.f32 %v735, %v721
        %v737 = vadd.f32 %v736, %v722
        %v738 = vadd.f32 %v737, %v723
        %v739 = vadd.f32 %v738, %v724
        %v740 = vadd.f32 %v739, %v725
        %v741 = vrot.slane %v740, 4
        %v742 = vadd.f32 %v740, %v741
        %v743 = vrot.slane %v742, 2
        %v744 = vadd.f32 %v742, %v743
        %v745 = vrot.slane %v744, 1
        %v746 = vadd.f32 %v744, %v745
        %v747 = vmul.f32 %v746, 0.0078125
        %v748 = vmul.f32 %v710, %v710
        %v749 = vmul.f32 %v711, %v711
        %v750 = vmul.f32 %v712, %v712
        %v751 = vmul.f32 %v713, %v713
        %v752 = vmul.f32 %v714, %v714
        %v753 = vmul.f32 %v715, %v715
        %v754 = vmul.f32 %v716, %v716
        %v755 = vmul.f32 %v717, %v717
        %v756 = vmul.f32 %v718, %v718
        %v757 = vmul.f32 %v719, %v719
        %v758 = vmul.f32 %v720, %v720
        %v759 = vmul.f32 %v721, %v721
        %v760 = vmul.f32 %v722, %v722
        %v761 = vmul.f32 %v723, %v723
        %v762 = vmul.f32 %v724, %v724
        %v763 = vmul.f32 %v725, %v725
        %v764 = vadd.f32 %v748, %v749
        %v765 = vadd.f32 %v764, %v750
        %v766 = vadd.f32 %v765, %v751
        %v767 = vadd.f32 %v766, %v752
        %v768 = vadd.f32 %v767, %v753
        %v769 = vadd.f32 %v768, %v754
        %v770 = vadd.f32 %v769, %v755
        %v771 = vadd.f32 %v770, %v756
        %v772 = vadd.f32 %v771, %v757
        %v773 = vadd.f32 %v772, %v758
        %v774 = vadd.f32 %v773, %v759
        %v775 = vadd.f32 %v774, %v760
        %v776 = vadd.f32 %v775, %v761
        %v777 = vadd.f32 %v776, %v762
        %v778 = vadd.f32 %v777, %v763
        %v779 = vrot.slane %v778, 4
        %v780 = vadd.f32 %v778, %v779
        %v781 = vrot.slane %v780, 2
        %v782 = vadd.f32 %v780, %v781
        %v783 = vrot.slane %v782, 1
        %v784 = vadd.f32 %v782, %v783
        %v785 = vmul.f32 %v784, 0.0078125
        %v786 = vmul.f32 %v747, %v747
        %v787 = vsub.f32 %v785, %v786
        %v788 = vadd.f32 %v787, 0.001
        %v789 = vrsqrt.pop %v788
        %v790 = vld [vmem:[%s278] sm:$0x1]
        %v791 = vmul.f32 %v790, %v789
        %v792 = vld [vmem:[%s281] sm:$0x1]
        %v793 = vmul.f32 %v747, %v791
        %v794 = vsub.f32 %v792, %v793
        %v796 = vlaneseq
        %v797 = vshrl.u32 %v796, 7
        %v798 = vsub.s32 0, %v797
        %v799 = vrot.slane %v791, %v798
        %v801 = vmul.f32 %v710, %v799
        %v802 = vmul.f32 %v711, %v799
        %v803 = vmul.f32 %v712, %v799
        %v804 = vmul.f32 %v713, %v799
        %v805 = vmul.f32 %v714, %v799
        %v806 = vmul.f32 %v715, %v799
        %v807 = vmul.f32 %v716, %v799
        %v808 = vmul.f32 %v717, %v799
        %v809 = vmul.f32 %v718, %v799
        %v810 = vmul.f32 %v719, %v799
        %v811 = vmul.f32 %v720, %v799
        %v812 = vmul.f32 %v721, %v799
        %v813 = vmul.f32 %v722, %v799
        %v814 = vmul.f32 %v723, %v799
        %v815 = vmul.f32 %v724, %v799
        %v816 = vmul.f32 %v725, %v799
        %v818 = vlaneseq
        %v819 = vshrl.u32 %v818, 7
        %v820 = vsub.s32 0, %v819
        %v821 = vrot.slane %v794, %v820
        %v823 = vadd.f32 %v801, %v821
        %v824 = vadd.f32 %v802, %v821
        %v825 = vadd.f32 %v803, %v821
        %v826 = vadd.f32 %v804, %v821
        %v827 = vadd.f32 %v805, %v821
        %v828 = vadd.f32 %v806, %v821
        %v829 = vadd.f32 %v807, %v821
        %v830 = vadd.f32 %v808, %v821
        %v831 = vadd.f32 %v809, %v821
        %v832 = vadd.f32 %v810, %v821
        %v833 = vadd.f32 %v811, %v821
        %v834 = vadd.f32 %v812, %v821
        %v835 = vadd.f32 %v813, %v821
        %v836 = vadd.f32 %v814, %v821
        %v837 = vadd.f32 %v815, %v821
        %v838 = vadd.f32 %v816, %v821
        %839 = vst [vmem:[%s275] sm:$0xff] %v823
        %840 = vst [vmem:[%s275 + $0x8] sm:$0xff] %v824
        %841 = vst [vmem:[%s275 + $0x10] sm:$0xff] %v825
        %842 = vst [vmem:[%s275 + $0x18] sm:$0xff] %v826
        %843 = vst [vmem:[%s275 + $0x20] sm:$0xff] %v827
        %844 = vst [vmem:[%s275 + $0x28] sm:$0xff] %v828
        %845 = vst [vmem:[%s275 + $0x30] sm:$0xff] %v829
        %846 = vst [vmem:[%s275 + $0x38] sm:$0xff] %v830
        %847 = vst [vmem:[%s275 + $0x40] sm:$0xff] %v831
        %848 = vst [vmem:[%s275 + $0x48] sm:$0xff] %v832
        %849 = vst [vmem:[%s275 + $0x50] sm:$0xff] %v833
        %850 = vst [vmem:[%s275 + $0x58] sm:$0xff] %v834
        %851 = vst [vmem:[%s275 + $0x60] sm:$0xff] %v835
        %852 = vst [vmem:[%s275 + $0x68] sm:$0xff] %v836
        %853 = vst [vmem:[%s275 + $0x70] sm:$0xff] %v837
        %854 = vst [vmem:[%s275 + $0x78] sm:$0xff] %v838
        %s855 = sand.u32 %s136, 1
        %s856 = scalar_lea.sflag [#allocation5], %s855
        %s857 = sand.u32 %s136, 1
        %s858 = smul.addr %s857, 128
        %s859 = scalar_lea.vmem [#allocation8], %s858
        // Predicated region
        $region45: #{tpu_custom_call.1} parent=35 // pred_check
          %p860 = pneg %p146
        $region46: #{tpu_custom_call.1} parent=35 // pred_check_branch
          %862 = sbr.rel (%p860) target = $region48
        $region47: #{tpu_custom_call.1} parent=35 // pred_region
          %s864 = ssub.s32 2048, 2048
          %865 = vsyncadd %s856, %s864
          %s866 = smul.addr %s24, 128
          %s867 = scalar_lea.hbm %s4, %s866
          %s868 = sshll.u32 %s859, 4
          %s869 = int_to_ptr.vmem [resolvable:$true] %s868
          %874 = dma.vmem_to_hbm [thread:$0]  %s869, 2048, %s867, %s856, 128, 256, 8
        $region48: #{tpu_custom_call.1} parent=35 // pred_fallthru
          _
      $region36: #{tpu_custom_call.1} parent=5 // pred_fallthru
        _
      %p875 = scmp.le.s32.totalorder 2, %s19
      // Predicated region
      $region49: #{tpu_custom_call.1} parent=5 // pred_check
        %p876 = pneg %p875
      $region50: #{tpu_custom_call.1} parent=5 // pred_check_branch
        %878 = sbr.rel (%p876) target = $region52
      $region51: #{tpu_custom_call.1} parent=5 // pred_region
        %s879 = ssub.s32 %s19, 2
        // Predicated region
        $region53: #{tpu_custom_call.1} parent=51 // pred_check
          %p880 = pneg %p152
        $region54: #{tpu_custom_call.1} parent=51 // pred_check_branch
          %882 = sbr.rel (%p880) target = $region56
        $region55: #{tpu_custom_call.1} parent=51 // pred_region
          %s883 = sand.u32 %s137, 1
          %s884 = scalar_lea.sflag [#allocation5], %s883
          %s885 = sand.u32 %s137, 1
          %s886 = smul.addr %s885, 128
          %s887 = scalar_lea.vmem [#allocation8], %s886
          %888 = dma.done %s884, 2048
        $region56: #{tpu_custom_call.1} parent=51 // pred_fallthru
          _
      $region52: #{tpu_custom_call.1} parent=5 // pred_fallthru
        _
    $region6: #{tpu_custom_call.1} parent=1 // loop_footer
      %s23 = sadd.s32 1, %s19
    $region7: #{tpu_custom_call.1} parent=1 // loop_footer_branch
      %18 = sbr.rel target = $region3
    $region8: #{tpu_custom_call.1} parent=1 // loop_exit
      _
    %889 = vsyncpa [#allocation4], 1
    %s890 = scalar_lea.sflag [#allocation4], 1
    %891 = vsyncpa %s890, 1
    %892 = vsyncpa [#allocation7], 1
    %s893 = scalar_lea.sflag [#allocation7], 1
    %894 = vsyncpa %s893, 1
    %895 = vsyncpa [#allocation5], 1
    %s896 = scalar_lea.sflag [#allocation5], 1
    %897 = vsyncpa %s896, 1

</llo_original>
